<compile_context>
chip_gen: v5e
topology: v5e:2x2
jax: 0.10.0
libtpu: 0.0.40
codegen_flags: <defaults>
</compile_context>

<pallas_src>
import jax
import jax.numpy as jnp
from jax.experimental import pallas as pl
from jax.experimental.pallas import tpu as pltpu  # noqa: F401  (TPU backend)


def _round_up(x, m):
    return ((x + m - 1) // m) * m


def _full_spec(shape):
    nd = len(shape)
    return pl.BlockSpec(shape, lambda i, _nd=nd: (0,) * _nd)


# ----------------------------------------------------------------------------
# Kernel 1: LayerNorm over the last dim, elementwise_affine=False, eps=1e-5.
# All LayerNorm call sites share one pallas_call over a concatenated slab.
# ----------------------------------------------------------------------------
def _layernorm_kernel(x_ref, o_ref):
    x = x_ref[...].astype(jnp.float32)
    mean = jnp.mean(x, axis=-1, keepdims=True)
    var = jnp.mean(jnp.square(x - mean), axis=-1, keepdims=True)
    o_ref[...] = ((x - mean) * jax.lax.rsqrt(var + 1e-5)).astype(o_ref.dtype)


def layer_norm_no_affine(*tensors):
    """nn.LayerNorm(d, elementwise_affine=False), PyTorch eps=1e-5, applied to
    every input tensor via a single fused pallas_call."""
    d = tensors[0].shape[-1]
    flats = [t.reshape(-1, d) for t in tensors]
    rows = [f.shape[0] for f in flats]
    x = jnp.concatenate(flats, axis=0) if len(flats) > 1 else flats[0]
    n = x.shape[0]
    n_pad = _round_up(max(n, 8), 8)                 # f32 sublane alignment
    if n_pad != n:
        x = jnp.pad(x, ((0, n_pad - n), (0, 0)))
    out = pl.pallas_call(
        _layernorm_kernel,
        out_shape=jax.ShapeDtypeStruct((n_pad, d), x.dtype),
        grid=(1,),
        in_specs=[_full_spec((n_pad, d))],
        out_specs=_full_spec((n_pad, d)),
    )(x)
    res, off = [], 0
    for t, r in zip(tensors, rows):
        res.append(out[off:off + r].reshape(t.shape))
        off += r
    return res if len(res) > 1 else res[0]


# ----------------------------------------------------------------------------
# Kernel 2: fused OutputUnitMultiChoices head for all candidates (inference).
#   shared  = [qv | qh]        @ Ws + b_fused                 (B_pad, D)
#   cand    = [av_a | ah_a]... @ Wc   (all candidates stacked) (A*B_pad, D)
#   pre_a   = shared + cand[a]
#   h_a     = ELU(pre_a)                                       (f32)
#   out    += h_a @ W2big[a*D:(a+1)*D]    -> lane a holds candidate-a's score
# Ws/Wc/b_fused/W2big are host-folded from the 6 Linear layers + BatchNorm.
# Dropout layers are identity at inference.
# ----------------------------------------------------------------------------
def _b2a_head_kernel(xs_ref, xc_ref, ws_ref, wc_ref, b_ref, w2_ref, out_ref):
    f32 = jnp.float32
    b_pad = xs_ref.shape[0]
    d = ws_ref.shape[1]
    num_cand = xc_ref.shape[0] // b_pad

    # Shared (question) path: computed once for B rows, reused by all candidates.
    shared = jnp.dot(xs_ref[...], ws_ref[...], preferred_element_type=f32) + b_ref[...]
    # Candidate path: one matmul for all candidates stacked on the row axis.
    cand = jnp.dot(xc_ref[...], wc_ref[...], preferred_element_type=f32)

    acc = jnp.zeros(out_ref.shape, f32)
    for a in range(num_cand):                       # static unroll (5 candidates)
        pre = shared + cand[a * b_pad:(a + 1) * b_pad, :]
        h = jnp.where(pre > 0.0, pre, jnp.expm1(pre))          # ELU(alpha=1), f32
        h = h.astype(w2_ref.dtype)
        # W2big block a is w2_fold placed on lane a -> lane-dense accumulation.
        acc = acc + jnp.dot(h, w2_ref[pl.ds(a * d, d), :],
                            preferred_element_type=f32)
    out_ref[...] = acc


def _fold_output_unit_params(p):
    """Fold the 4 projections + Linear(4D,D) into Ws/Wc/b_fused and the
    BatchNorm1d (eval) + Linear(D,1) into (w2_fold, b2_fold)."""
    D = p["w_q"].shape[0]
    eps = 1e-5
    wc1t = p["w_c1"].T                                        # (4D, D)
    # torch.cat order is [q_visual, question, a_visual, ans_candidates]
    w_vq_f = p["w_vq"].T @ wc1t[0 * D:1 * D]                  # (2D, D)
    w_q_f = p["w_q"].T @ wc1t[1 * D:2 * D]                    # (D,  D)
    w_va_f = p["w_va"].T @ wc1t[2 * D:3 * D]                  # (2D, D)
    w_a_f = p["w_a"].T @ wc1t[3 * D:4 * D]                    # (D,  D)
    b_fused = (p["b_vq"] @ wc1t[0 * D:1 * D] + p["b_q"] @ wc1t[1 * D:2 * D]
               + p["b_va"] @ wc1t[2 * D:3 * D] + p["b_a"] @ wc1t[3 * D:4 * D]
               + p["b_c1"])
    bn_scale = p["bn_gamma"] / jnp.sqrt(p["bn_var"] + eps)
    bn_shift = p["bn_beta"] - p["bn_mean"] * bn_scale
    w2_fold = bn_scale * p["w_c2"][0]                         # (D,)
    b2_fold = p["b_c2"][0] + jnp.sum(bn_shift * p["w_c2"][0])
    ws = jnp.concatenate([w_vq_f, w_q_f], axis=0)             # (3D, D)
    wc = jnp.concatenate([w_va_f, w_a_f], axis=0)             # (3D, D)
    return ws, wc, b_fused[None, :], w2_fold, b2_fold


def b2a_classify(q_v_emb, qa_v_embs, ques_hidden, qas_hiddens, params,
                 use_bf16=False):
    """B2A classification head for all 5 candidates in one fused kernel.
    Returns (out[B, A], predict_idx[B]) matching stack/transpose/squeeze/argmax."""
    A, B = qa_v_embs.shape[0], qa_v_embs.shape[1]
    D = ques_hidden.shape[-1]
    ws, wc, b_fused, w2_fold, b2_fold = _fold_output_unit_params(params)

    b_pad = max(8, _round_up(B, 8))                 # f32 sublane alignment
    xs = jnp.concatenate([q_v_emb, ques_hidden], axis=-1)         # (B, 3D)
    xc = jnp.concatenate([qa_v_embs, qas_hiddens], axis=-1)       # (A, B, 3D)
    xs = jnp.pad(xs, ((0, b_pad - B), (0, 0)))
    xc = jnp.pad(xc, ((0, 0), (0, b_pad - B), (0, 0))).reshape(A * b_pad, 3 * D)

    lanes = 128                                     # candidate index on lanes
    assert A <= lanes
    eye = jnp.eye(A, lanes, dtype=w2_fold.dtype)                  # (A, 128)
    w2_big = (eye[:, None, :] * w2_fold[None, :, None]).reshape(A * D, lanes)

    # bf16 matmul path for v6e/v7x; elementwise math stays f32 inside the kernel.
    cdt = jnp.bfloat16 if use_bf16 else jnp.float32
    xs_k, xc_k, ws_k, wc_k, w2_k = (t.astype(cdt) for t in (xs, xc, ws, wc, w2_big))
    args = [xs_k, xc_k, ws_k, wc_k, b_fused.astype(jnp.float32), w2_k]

    # TODO(synk): if batch * candidates ever grows large, switch to row-tiled
    # BlockSpecs with a "parallel" grid axis (megacore on v7x) instead of grid=(1,).
    out_pad = pl.pallas_call(
        _b2a_head_kernel,
        out_shape=jax.ShapeDtypeStruct((b_pad, lanes), jnp.float32),
        grid=(1,),
        in_specs=[_full_spec(a.shape) for a in args],
        out_specs=_full_spec((b_pad, lanes)),
    )(*args)

    out = out_pad[:B, :A] + b2_fold        # == torch.stack(...,0).transpose(1,0).squeeze()
    predict_idx = jnp.argmax(out, axis=1)  # torch.max(out, 1)[1]
    return out, predict_idx


# ----------------------------------------------------------------------------
# Pure-JAX reference (mirrors the PyTorch ops exactly, no folding) for checking.
# ----------------------------------------------------------------------------
def _output_unit_reference(qv, av, q, a, p):
    eps = 1e-5
    qv_p = qv @ p["w_vq"].T + p["b_vq"]
    av_p = av @ p["w_va"].T + p["b_va"]
    q_p = q @ p["w_q"].T + p["b_q"]
    a_p = a @ p["w_a"].T + p["b_a"]
    cat = jnp.concatenate([qv_p, q_p, av_p, a_p], axis=1)
    h = cat @ p["w_c1"].T + p["b_c1"]
    h = jnp.where(h > 0, h, jnp.expm1(h))
    h = (h - p["bn_mean"]) / jnp.sqrt(p["bn_var"] + eps) * p["bn_gamma"] + p["bn_beta"]
    return h @ p["w_c2"].T + p["b_c2"]


def _b2a_classify_reference(q_v_emb, qa_v_embs, ques_hidden, qas_hiddens, p):
    scores = [
        _output_unit_reference(q_v_emb, qa_v_embs[a], ques_hidden, qas_hiddens[a], p)
        for a in range(qa_v_embs.shape[0])
    ]
    out = jnp.stack(scores, 0)[..., 0].transpose(1, 0)
    return out, jnp.argmax(out, axis=1)


# ----------------------------------------------------------------------------
# Deterministic parameter initialization (shapes from OutputUnitMultiChoices)
# ----------------------------------------------------------------------------
def init_params(key, module_dim):
    D = module_dim
    ks = jax.random.split(key, 6)

    def lin(k, out_d, in_d):
        kw, kb = jax.random.split(k)
        w = jax.random.normal(kw, (out_d, in_d), jnp.float32) / jnp.sqrt(jnp.float32(in_d))
        b = jax.random.normal(kb, (out_d,), jnp.float32) * 0.01
        return w, b

    p = {}
    p["w_q"], p["b_q"] = lin(ks[0], D, D)          # question_proj
    p["w_a"], p["b_a"] = lin(ks[1], D, D)          # ans_candidates_proj
    p["w_vq"], p["b_vq"] = lin(ks[2], D, 2 * D)    # v_question_proj
    p["w_va"], p["b_va"] = lin(ks[3], D, 2 * D)    # v_ans_candidates_proj
    p["w_c1"], p["b_c1"] = lin(ks[4], D, 4 * D)    # classifier Linear(4D, D)
    p["w_c2"], p["b_c2"] = lin(ks[5], 1, D)        # classifier Linear(D, 1)
    p["bn_gamma"] = jnp.ones((D,), jnp.float32)    # BatchNorm1d (eval stats)
    p["bn_beta"] = jnp.zeros((D,), jnp.float32)
    p["bn_mean"] = jnp.zeros((D,), jnp.float32)
    p["bn_var"] = jnp.ones((D,), jnp.float32)
    return p


if __name__ == "__main__":
    key = jax.random.PRNGKey(0)
    B, H, L, NC, A = 4, 64, 8, 8, 5          # batch, hidden, seq-len, num-clips, 5 candidates
    D = 2 * H                                 # module_dim = hidden_size * 2 = 128

    k = jax.random.split(key, 9)
    params = init_params(k[0], D)

    # Synthetic encoder outputs -> fused LayerNorm kernel (v_input_ln / q_input_ln)
    app_output = jax.random.normal(k[1], (B, NC, D), jnp.float32)
    mot_output = jax.random.normal(k[2], (B, NC, D), jnp.float32)
    ques_output = jax.random.normal(k[3], (B, L, D), jnp.float32)
    app_ln, mot_ln, ques_ln = layer_norm_no_affine(app_output, mot_output, ques_output)

    # LayerNorm check against a plain-JAX reference
    def ln_ref(x):
        m = jnp.mean(x, axis=-1, keepdims=True)
        v = jnp.mean(jnp.square(x - m), axis=-1, keepdims=True)
        return (x - m) / jnp.sqrt(v + 1e-5)

    assert jnp.allclose(app_ln, ln_ref(app_output), atol=1e-4, rtol=1e-4)
    assert jnp.allclose(ques_ln, ln_ref(ques_output), atol=1e-4, rtol=1e-4)

    # TODO(synk): q2v_v2v (SingleSimpleAttention / AdjGenerator / GCN) definitions are
    # not provided; the resulting visual embeddings and GRU hiddens are fed directly.
    q_v_emb = jax.random.normal(k[4], (B, 2 * D), jnp.float32)       # cat of two D-means
    qa_v_embs = jax.random.normal(k[5], (A, B, 2 * D), jnp.float32)  # per candidate
    ques_hidden = jax.random.normal(k[6], (B, D), jnp.float32)
    qas_hiddens = jax.random.normal(k[7], (A, B, D), jnp.float32)

    # f32 path (numerically checked against the un-folded reference)
    out, predict_idx = b2a_classify(q_v_emb, qa_v_embs, ques_hidden, qas_hiddens, params)
    out_ref, _ = _b2a_classify_reference(q_v_emb, qa_v_embs, ques_hidden, qas_hiddens, params)
    jax.block_until_ready((app_ln, mot_ln, ques_ln, out, predict_idx))
    assert out.shape == (B, A) and predict_idx.shape == (B,)
    assert jnp.allclose(out, out_ref, atol=2e-3, rtol=2e-3)

    # bf16 matmul path (v6e/v7x) — compile/run coverage + sanity check
    out_bf, idx_bf = b2a_classify(q_v_emb, qa_v_embs, ques_hidden, qas_hiddens,
                                  params, use_bf16=True)
    jax.block_until_ready((out_bf, idx_bf))
    assert out_bf.shape == (B, A) and bool(jnp.all(jnp.isfinite(out_bf)))

    print("KERNEL_OK")
</pallas_src>

<mosaic_0001>
module attributes {stable_mosaic.version = 11 : i64} {
  func.func @_layernorm_kernel(%arg0: i32, %arg1: memref<96x128xf32, #tpu.memory_space<vmem>>, %arg2: memref<96x128xf32, #tpu.memory_space<vmem>>) attributes {dimension_semantics = [#tpu.dimension_semantics<arbitrary>], iteration_bounds = array<i64: 1>, scalar_prefetch = 0 : i64, scratch_operands = 0 : i64, tpu.core_type = #tpu.core_type<tc>, window_params = [{pipeline_mode = #tpu.pipeline_mode<synchronous>, transform_indices = @transform_0, window_bounds = array<i64: 96, 128>}, {pipeline_mode = #tpu.pipeline_mode<synchronous>, transform_indices = @transform_1, window_bounds = array<i64: 96, 128>}]} {
    %c0 = arith.constant 0 : index
    %c0_0 = arith.constant 0 : index
    %0 = vector.load %arg1[%c0, %c0_0] : memref<96x128xf32, #tpu.memory_space<vmem>>, vector<96x128xf32>
    %cst = arith.constant dense<0.000000e+00> : vector<96xf32>
    %1 = vector.multi_reduction <add>, %0, %cst [1] : vector<96x128xf32> to vector<96xf32>
    %2 = vector.shape_cast %1 : vector<96xf32> to vector<96x1xf32>
    %cst_1 = arith.constant 1.280000e+02 : f32
    %3 = vector.broadcast %cst_1 : f32 to vector<96x1xf32>
    %4 = arith.divf %2, %3 : vector<96x1xf32>
    %5 = vector.broadcast %4 : vector<96x1xf32> to vector<96x128xf32>
    %6 = arith.subf %0, %5 : vector<96x128xf32>
    %7 = arith.mulf %6, %6 : vector<96x128xf32>
    %cst_2 = arith.constant dense<0.000000e+00> : vector<96xf32>
    %8 = vector.multi_reduction <add>, %7, %cst_2 [1] : vector<96x128xf32> to vector<96xf32>
    %9 = vector.shape_cast %8 : vector<96xf32> to vector<96x1xf32>
    %cst_3 = arith.constant 1.280000e+02 : f32
    %10 = vector.broadcast %cst_3 : f32 to vector<96x1xf32>
    %11 = arith.divf %9, %10 : vector<96x1xf32>
    %12 = vector.broadcast %4 : vector<96x1xf32> to vector<96x128xf32>
    %13 = arith.subf %0, %12 : vector<96x128xf32>
    %cst_4 = arith.constant 9.99999974E-6 : f32
    %14 = vector.broadcast %cst_4 : f32 to vector<96x1xf32>
    %15 = arith.addf %11, %14 : vector<96x1xf32>
    %16 = math.rsqrt %15 : vector<96x1xf32>
    %17 = vector.broadcast %16 : vector<96x1xf32> to vector<96x128xf32>
    %18 = arith.mulf %13, %17 : vector<96x128xf32>
    %c0_5 = arith.constant 0 : index
    %c0_6 = arith.constant 0 : index
    %19 = vector.load %arg2[%c0_5, %c0_6] : memref<96x128xf32, #tpu.memory_space<vmem>>, vector<96x128xf32>
    tpu.vector_store %arg2[%c0_5, %c0_6], %18 {strides = array<i32>} : memref<96x128xf32, #tpu.memory_space<vmem>>, vector<96x128xf32>,
    return
  }
  func.func @transform_0(%arg0: i32) -> (i32, i32) {
    %c0_i32 = arith.constant 0 : i32
    %c0_i32_0 = arith.constant 0 : i32
    %c0_i32_1 = arith.constant 0 : i32
    return %c0_i32, %c0_i32_0 : i32, i32
  }
  func.func @transform_1(%arg0: i32) -> (i32, i32) {
    %c0_i32 = arith.constant 0 : i32
    %c0_i32_0 = arith.constant 0 : i32
    %c0_i32_1 = arith.constant 0 : i32
    return %c0_i32, %c0_i32_0 : i32, i32
  }
}

</mosaic_0001>

<llo_original>
// kernel: tpu_custom_call.1
$region0: #{tpu_custom_call.1}
  #allocation0 [shape = 'u32[]', space=smem, size = 0x4, offset = 0x4, fixed_abs, tag = 'smem constant byte address 0x4 - core index']
  #allocation1 [shape = 'u32[72,128]{1,0:T(1,128)}', space=vmem, size = 0x9000, scoped, tag = 'internal scratch']
  %s0 = inlined_call_operand.hbm [shape: f32[96,128], index: 0, kind: input, shape index: {}]
  %s1 = inlined_call_operand.hbm [shape: f32[96,128], index: 1, kind: output, shape index: {}]
  %s2 = sld [smem:[#allocation0]]
  $region18: #{tpu_custom_call.1} parent=0
    _
  %s4 = ssub.s32 1, %s2
  %s5 = scalar_select 0, %s4, %s2
  $region1: #{tpu_custom_call.1} parent=0
    #allocation2 [shape = 'u8[49152]{0}', space=vmem, size = 0xc000, scoped, tag = 'input window, operand 0, single buffered']
    #allocation3 [shape = 's32[1]{0}', space=sflag, size = 0x4, scoped, tag = 'scoped memory for tpu_custom_call.1']
    #allocation4 [shape = 's32[1]{0}', space=sflag, size = 0x4, scoped, tag = 'scoped memory for tpu_custom_call.1']
    #allocation5 [shape = 'u8[49152]{0}', space=vmem, size = 0xc000, scoped, tag = 'output window, operand 0, single buffered']
    %6 = vsyncpa [#allocation3], 0
    %7 = vsyncpa [#allocation4], 0
    // Predicated region
    $region2: #{tpu_custom_call.1} parent=1 // pred_check
      _
    $region3: #{tpu_custom_call.1} parent=1 // pred_check_branch
      %9 = sbr.rel (0) target = $region5
    $region4: #{tpu_custom_call.1} parent=1 // pred_region
      %11 = vsyncadd [#allocation3], 0
      %s12 = sshll.u32 %s0, 4
      %s13 = int_to_ptr.hbm [resolvable:$true] %s12
      %s14 = sshll.u32 [#allocation2], 4
      %s15 = int_to_ptr.vmem [resolvable:$true] %s14
      %20 = dma.hbm_to_vmem [thread:$0]  %s13, 1536, %s15, [#allocation3], 128, 128, 8
    $region5: #{tpu_custom_call.1} parent=1 // pred_fallthru
      _
    // Predicated region
    $region6: #{tpu_custom_call.1} parent=1 // pred_check
      _
    $region7: #{tpu_custom_call.1} parent=1 // pred_check_branch
      %22 = sbr.rel (0) target = $region9
    $region8: #{tpu_custom_call.1} parent=1 // pred_region
      %24 = dma.done [#allocation3], 1536
    $region9: #{tpu_custom_call.1} parent=1 // pred_fallthru
      _
    %v25 = vld [vmem:[#allocation2] sm:$0xff]
    %v26 = vld [vmem:[#allocation2 + $0x8] sm:$0xff]
    %v27 = vld [vmem:[#allocation2 + $0x10] sm:$0xff]
    %v28 = vld [vmem:[#allocation2 + $0x18] sm:$0xff]
    %v29 = vld [vmem:[#allocation2 + $0x20] sm:$0xff]
    %v30 = vld [vmem:[#allocation2 + $0x28] sm:$0xff]
    %v31 = vld [vmem:[#allocation2 + $0x30] sm:$0xff]
    %v32 = vld [vmem:[#allocation2 + $0x38] sm:$0xff]
    %v33 = vld [vmem:[#allocation2 + $0x40] sm:$0xff]
    %v34 = vld [vmem:[#allocation2 + $0x48] sm:$0xff]
    %v35 = vld [vmem:[#allocation2 + $0x50] sm:$0xff]
    %v36 = vld [vmem:[#allocation2 + $0x58] sm:$0xff]
    %37 = vadd.xlane.f32.xlu0 %v25
    %v38 = vpop.xlane.xlu0 %37
    %39 = vadd.xlane.f32.xlu0 %v26
    %v40 = vpop.xlane.xlu0 %39
    %41 = vadd.xlane.f32.xlu0 %v27
    %v42 = vpop.xlane.xlu0 %41
    %43 = vadd.xlane.f32.xlu0 %v28
    %v44 = vpop.xlane.xlu0 %43
    %45 = vadd.xlane.f32.xlu0 %v29
    %v46 = vpop.xlane.xlu0 %45
    %47 = vadd.xlane.f32.xlu0 %v30
    %v48 = vpop.xlane.xlu0 %47
    %49 = vadd.xlane.f32.xlu0 %v31
    %v50 = vpop.xlane.xlu0 %49
    %51 = vadd.xlane.f32.xlu0 %v32
    %v52 = vpop.xlane.xlu0 %51
    %53 = vadd.xlane.f32.xlu0 %v33
    %v54 = vpop.xlane.xlu0 %53
    %55 = vadd.xlane.f32.xlu0 %v34
    %v56 = vpop.xlane.xlu0 %55
    %57 = vadd.xlane.f32.xlu0 %v35
    %v58 = vpop.xlane.xlu0 %57
    %59 = vadd.xlane.f32.xlu0 %v36
    %v60 = vpop.xlane.xlu0 %59
    %v61 = vrcp.pop 128.0
    %v62 = vmul.f32 128.0, %v61
    %v63 = vsub.f32 1.0, %v62
    %v64 = vmul.f32 %v61, %v63
    %v65 = vadd.f32 %v61, %v64
    %vm66 = vweird.f32 %v61
    %v67 = vsel %vm66, %v61, %v65
    %v68 = vmul.f32 %v38, %v67
    %v69 = vmul.f32 %v40, %v67
    %v70 = vmul.f32 %v42, %v67
    %v71 = vmul.f32 %v44, %v67
    %v72 = vmul.f32 %v46, %v67
    %v73 = vmul.f32 %v48, %v67
    %v74 = vmul.f32 %v50, %v67
    %v75 = vmul.f32 %v52, %v67
    %v76 = vmul.f32 %v54, %v67
    %v77 = vmul.f32 %v56, %v67
    %v78 = vmul.f32 %v58, %v67
    %v79 = vmul.f32 %v60, %v67
    %v80 = vsub.f32 %v25, %v68
    %v81 = vsub.f32 %v26, %v69
    %v82 = vsub.f32 %v27, %v70
    %v83 = vsub.f32 %v28, %v71
    %v84 = vsub.f32 %v29, %v72
    %v85 = vsub.f32 %v30, %v73
    %v86 = vsub.f32 %v31, %v74
    %v87 = vsub.f32 %v32, %v75
    %v88 = vsub.f32 %v33, %v76
    %v89 = vsub.f32 %v34, %v77
    %v90 = vsub.f32 %v35, %v78
    %v91 = vsub.f32 %v36, %v79
    %v92 = vmul.f32 %v80, %v80
    %v93 = vmul.f32 %v81, %v81
    %v94 = vmul.f32 %v82, %v82
    %v95 = vmul.f32 %v83, %v83
    %v96 = vmul.f32 %v84, %v84
    %v97 = vmul.f32 %v85, %v85
    %v98 = vmul.f32 %v86, %v86
    %v99 = vmul.f32 %v87, %v87
    %v100 = vmul.f32 %v88, %v88
    %v101 = vmul.f32 %v89, %v89
    %v102 = vmul.f32 %v90, %v90
    %v103 = vmul.f32 %v91, %v91
    %104 = vadd.xlane.f32.xlu0 %v92
    %v105 = vpop.xlane.xlu0 %104
    %106 = vadd.xlane.f32.xlu0 %v93
    %v107 = vpop.xlane.xlu0 %106
    %108 = vadd.xlane.f32.xlu0 %v94
    %v109 = vpop.xlane.xlu0 %108
    %110 = vadd.xlane.f32.xlu0 %v95
    %v111 = vpop.xlane.xlu0 %110
    %112 = vadd.xlane.f32.xlu0 %v96
    %v113 = vpop.xlane.xlu0 %112
    %114 = vadd.xlane.f32.xlu0 %v97
    %v115 = vpop.xlane.xlu0 %114
    %116 = vadd.xlane.f32.xlu0 %v98
    %v117 = vpop.xlane.xlu0 %116
    %118 = vadd.xlane.f32.xlu0 %v99
    %v119 = vpop.xlane.xlu0 %118
    %120 = vadd.xlane.f32.xlu0 %v100
    %v121 = vpop.xlane.xlu0 %120
    %122 = vadd.xlane.f32.xlu0 %v101
    %v123 = vpop.xlane.xlu0 %122
    %124 = vadd.xlane.f32.xlu0 %v102
    %v125 = vpop.xlane.xlu0 %124
    %126 = vadd.xlane.f32.xlu0 %v103
    %v127 = vpop.xlane.xlu0 %126
    %v128 = vmul.f32 %v105, %v67
    %v129 = vmul.f32 %v107, %v67
    %v130 = vmul.f32 %v109, %v67
    %v131 = vmul.f32 %v111, %v67
    %v132 = vmul.f32 %v113, %v67
    %v133 = vmul.f32 %v115, %v67
    %v134 = vmul.f32 %v117, %v67
    %v135 = vmul.f32 %v119, %v67
    %v136 = vmul.f32 %v121, %v67
    %v137 = vmul.f32 %v123, %v67
    %v138 = vmul.f32 %v125, %v67
    %v139 = vmul.f32 %v127, %v67
    %v140 = vadd.f32 %v128, 1e-05
    %v141 = vadd.f32 %v129, 1e-05
    %v142 = vadd.f32 %v130, 1e-05
    %v143 = vadd.f32 %v131, 1e-05
    %v144 = vadd.f32 %v132, 1e-05
    %v145 = vadd.f32 %v133, 1e-05
    %v146 = vadd.f32 %v134, 1e-05
    %v147 = vadd.f32 %v135, 1e-05
    %v148 = vadd.f32 %v136, 1e-05
    %v149 = vadd.f32 %v137, 1e-05
    %v150 = vadd.f32 %v138, 1e-05
    %v151 = vadd.f32 %v139, 1e-05
    %v152 = vrsqrt.pop %v140
    %v153 = vmul.f32 %v152, %v140
    %v154 = vmul.f32 %v153, %v152
    %v155 = vmul.f32 0.5, %v154
    %v156 = vsub.f32 1.5, %v155
    %v157 = vmul.f32 %v152, %v156
    %vm158 = vweird.f32 %v140
    %vm159 = vweird.f32 %v152
    %vm160 = vmor %vm158, %vm159
    %v161 = vsel %vm160, %v152, %v157
    %v162 = vrsqrt.pop %v141
    %v163 = vmul.f32 %v162, %v141
    %v164 = vmul.f32 %v163, %v162
    %v165 = vmul.f32 0.5, %v164
    %v166 = vsub.f32 1.5, %v165
    %v167 = vmul.f32 %v162, %v166
    %vm168 = vweird.f32 %v141
    %vm169 = vweird.f32 %v162
    %vm170 = vmor %vm168, %vm169
    %v171 = vsel %vm170, %v162, %v167
    %v172 = vrsqrt.pop %v142
    %v173 = vmul.f32 %v172, %v142
    %v174 = vmul.f32 %v173, %v172
    %v175 = vmul.f32 0.5, %v174
    %v176 = vsub.f32 1.5, %v175
    %v177 = vmul.f32 %v172, %v176
    %vm178 = vweird.f32 %v142
    %vm179 = vweird.f32 %v172
    %vm180 = vmor %vm178, %vm179
    %v181 = vsel %vm180, %v172, %v177
    %v182 = vrsqrt.pop %v143
    %v183 = vmul.f32 %v182, %v143
    %v184 = vmul.f32 %v183, %v182
    %v185 = vmul.f32 0.5, %v184
    %v186 = vsub.f32 1.5, %v185
    %v187 = vmul.f32 %v182, %v186
    %vm188 = vweird.f32 %v143
    %vm189 = vweird.f32 %v182
    %vm190 = vmor %vm188, %vm189
    %v191 = vsel %vm190, %v182, %v187
    %v192 = vrsqrt.pop %v144
    %v193 = vmul.f32 %v192, %v144
    %v194 = vmul.f32 %v193, %v192
    %v195 = vmul.f32 0.5, %v194
    %v196 = vsub.f32 1.5, %v195
    %v197 = vmul.f32 %v192, %v196
    %vm198 = vweird.f32 %v144
    %vm199 = vweird.f32 %v192
    %vm200 = vmor %vm198, %vm199
    %v201 = vsel %vm200, %v192, %v197
    %v202 = vrsqrt.pop %v145
    %v203 = vmul.f32 %v202, %v145
    %v204 = vmul.f32 %v203, %v202
    %v205 = vmul.f32 0.5, %v204
    %v206 = vsub.f32 1.5, %v205
    %v207 = vmul.f32 %v202, %v206
    %vm208 = vweird.f32 %v145
    %vm209 = vweird.f32 %v202
    %vm210 = vmor %vm208, %vm209
    %v211 = vsel %vm210, %v202, %v207
    %v212 = vrsqrt.pop %v146
    %v213 = vmul.f32 %v212, %v146
    %v214 = vmul.f32 %v213, %v212
    %v215 = vmul.f32 0.5, %v214
    %v216 = vsub.f32 1.5, %v215
    %v217 = vmul.f32 %v212, %v216
    %vm218 = vweird.f32 %v146
    %vm219 = vweird.f32 %v212
    %vm220 = vmor %vm218, %vm219
    %v221 = vsel %vm220, %v212, %v217
    %v222 = vrsqrt.pop %v147
    %v223 = vmul.f32 %v222, %v147
    %v224 = vmul.f32 %v223, %v222
    %v225 = vmul.f32 0.5, %v224
    %v226 = vsub.f32 1.5, %v225
    %v227 = vmul.f32 %v222, %v226
    %vm228 = vweird.f32 %v147
    %vm229 = vweird.f32 %v222
    %vm230 = vmor %vm228, %vm229
    %v231 = vsel %vm230, %v222, %v227
    %v232 = vrsqrt.pop %v148
    %v233 = vmul.f32 %v232, %v148
    %v234 = vmul.f32 %v233, %v232
    %v235 = vmul.f32 0.5, %v234
    %v236 = vsub.f32 1.5, %v235
    %v237 = vmul.f32 %v232, %v236
    %vm238 = vweird.f32 %v148
    %vm239 = vweird.f32 %v232
    %vm240 = vmor %vm238, %vm239
    %v241 = vsel %vm240, %v232, %v237
    %v242 = vrsqrt.pop %v149
    %v243 = vmul.f32 %v242, %v149
    %v244 = vmul.f32 %v243, %v242
    %v245 = vmul.f32 0.5, %v244
    %v246 = vsub.f32 1.5, %v245
    %v247 = vmul.f32 %v242, %v246
    %vm248 = vweird.f32 %v149
    %vm249 = vweird.f32 %v242
    %vm250 = vmor %vm248, %vm249
    %v251 = vsel %vm250, %v242, %v247
    %v252 = vrsqrt.pop %v150
    %v253 = vmul.f32 %v252, %v150
    %v254 = vmul.f32 %v253, %v252
    %v255 = vmul.f32 0.5, %v254
    %v256 = vsub.f32 1.5, %v255
    %v257 = vmul.f32 %v252, %v256
    %vm258 = vweird.f32 %v150
    %vm259 = vweird.f32 %v252
    %vm260 = vmor %vm258, %vm259
    %v261 = vsel %vm260, %v252, %v257
    %v262 = vrsqrt.pop %v151
    %v263 = vmul.f32 %v262, %v151
    %v264 = vmul.f32 %v263, %v262
    %v265 = vmul.f32 0.5, %v264
    %v266 = vsub.f32 1.5, %v265
    %v267 = vmul.f32 %v262, %v266
    %vm268 = vweird.f32 %v151
    %vm269 = vweird.f32 %v262
    %vm270 = vmor %vm268, %vm269
    %v271 = vsel %vm270, %v262, %v267
    %v272 = vmul.f32 %v80, %v161
    %v273 = vmul.f32 %v81, %v171
    %v274 = vmul.f32 %v82, %v181
    %v275 = vmul.f32 %v83, %v191
    %v276 = vmul.f32 %v84, %v201
    %v277 = vmul.f32 %v85, %v211
    %v278 = vmul.f32 %v86, %v221
    %v279 = vmul.f32 %v87, %v231
    %v280 = vmul.f32 %v88, %v241
    %v281 = vmul.f32 %v89, %v251
    %v282 = vmul.f32 %v90, %v261
    %v283 = vmul.f32 %v91, %v271
    %284 = vst [vmem:[#allocation5] sm:$0xff] %v272
    %285 = vst [vmem:[#allocation5 + $0x8] sm:$0xff] %v273
    %286 = vst [vmem:[#allocation5 + $0x10] sm:$0xff] %v274
    %287 = vst [vmem:[#allocation5 + $0x18] sm:$0xff] %v275
    %288 = vst [vmem:[#allocation5 + $0x20] sm:$0xff] %v276
    %289 = vst [vmem:[#allocation5 + $0x28] sm:$0xff] %v277
    %290 = vst [vmem:[#allocation5 + $0x30] sm:$0xff] %v278
    %291 = vst [vmem:[#allocation5 + $0x38] sm:$0xff] %v279
    %292 = vst [vmem:[#allocation5 + $0x40] sm:$0xff] %v280
    %293 = vst [vmem:[#allocation5 + $0x48] sm:$0xff] %v281
    %294 = vst [vmem:[#allocation5 + $0x50] sm:$0xff] %v282
    %295 = vst [vmem:[#allocation5 + $0x58] sm:$0xff] %v283
    // Predicated region
    $region10: #{tpu_custom_call.1} parent=1 // pred_check
      _
    $region11: #{tpu_custom_call.1} parent=1 // pred_check_branch
      %297 = sbr.rel (0) target = $region13
    $region12: #{tpu_custom_call.1} parent=1 // pred_region
      %299 = vsyncadd [#allocation4], 0
      %s300 = sshll.u32 [#allocation5], 4
      %s301 = int_to_ptr.vmem [resolvable:$true] %s300
      %s302 = sshll.u32 %s1, 4
      %s303 = int_to_ptr.hbm [resolvable:$true] %s302
      %308 = dma.vmem_to_hbm [thread:$0]  %s301, 1536, %s303, [#allocation4], 128, 128, 8
    $region13: #{tpu_custom_call.1} parent=1 // pred_fallthru
      _
    // Predicated region
    $region14: #{tpu_custom_call.1} parent=1 // pred_check
      _
    $region15: #{tpu_custom_call.1} parent=1 // pred_check_branch
      %310 = sbr.rel (0) target = $region17
    $region16: #{tpu_custom_call.1} parent=1 // pred_region
      %312 = dma.done [#allocation4], 1536
    $region17: #{tpu_custom_call.1} parent=1 // pred_fallthru
      _
    %313 = vsyncpa [#allocation3], 1
    %314 = vsyncpa [#allocation4], 1

</llo_original>
